<compile_context>
chip_gen: v7x
topology: tpu7x:2x2x1
jax: 0.10.0
libtpu: 0.0.40
codegen_flags: <defaults>
</compile_context>

<pallas_src>
import functools

import jax
import jax.numpy as jnp
from jax import lax
from jax.experimental import pallas as pl
from jax.experimental.pallas import tpu as pltpu


def _dwconv_s1_kernel(w_ref, b_ref, x_ref, o_ref, pad_ref, *, m, tcin):
    """stride == 1, padding fused via a VMEM scratch.

    w_ref  : SMEM (Cout*9,) f32 — BN-scale-folded taps, layout (cout, kh, kw)
    b_ref  : SMEM (Cout,)   f32 — folded BN bias
    x_ref  : VMEM (1, tcin, H, W)   raw (un-padded) input block
    o_ref  : VMEM (1, tc,  Ho, Wo)  output block, tc = m * tcin
    pad_ref: VMEM (H+2, W+2) f32 scratch — zero border, per-channel interior
    """
    H, W = x_ref.shape[2], x_ref.shape[3]
    Ho, Wo = o_ref.shape[2], o_ref.shape[3]
    Hp, Wp = H + 2, W + 2
    tc = m * tcin
    c0 = pl.program_id(1) * tc               # first global output channel

    # Fused zero padding: keep a 1-pixel zero border in the scratch; only the
    # interior is (re)written per channel.  The border is re-zeroed every grid
    # step so correctness never depends on which core executed step 0.
    zrow = jnp.zeros((1, Wp), jnp.float32)
    pad_ref[0:1, :] = zrow
    pad_ref[Hp - 1:Hp, :] = zrow
    zcol = jnp.zeros((Hp, 1), jnp.float32)
    pad_ref[:, 0:1] = zcol
    pad_ref[:, Wp - 1:Wp] = zcol

    def channel_body(ci, carry):
        # Load + f32-cast the input plane exactly once per input channel.
        pad_ref[1:H + 1, 1:W + 1] = x_ref[0, ci].astype(jnp.float32)
        # One row-window load per kh; the kw taps are in-register lane slices
        # (XLU shifts), shared across the m outputs of this input channel.
        rows = [pad_ref[kh:kh + Ho, :] for kh in range(3)]
        for j in range(m):                   # m is small and static
            co = ci * m + j
            wbase = (c0 + co) * 9
            acc = None                       # init with first tap product
            for kh in range(3):
                for kw in range(3):
                    term = rows[kh][:, kw:kw + Wo] * w_ref[wbase + kh * 3 + kw]
                    acc = term if acc is None else acc + term
            y = acc + b_ref[c0 + co]
            o_ref[0, co] = jnp.maximum(y, 0.0).astype(o_ref.dtype)
        return carry

    if tcin <= 2:                            # tiny blocks: fully static
        for ci in range(tcin):
            channel_body(ci, 0)
    else:                                    # bound vreg live ranges
        lax.fori_loop(0, tcin, channel_body, 0, unroll=2)


def _dwconv_planes_kernel(w_ref, b_ref, *refs, stride, m, tcin):
    """stride > 1: inputs are the stride^2 padded phase planes (unit-stride).

    refs = plane_0 .. plane_{s*s-1} (each (1, tcin, ph_h, ph_w)), then o_ref.
    """
    planes = refs[:-1]
    o_ref = refs[-1]
    Ho, Wo = o_ref.shape[2], o_ref.shape[3]
    tc = m * tcin
    c0 = pl.program_id(1) * tc

    # tap (kh, kw) of the padded input == unit-stride slice of phase plane
    # (kh % s, kw % s) at offset (kh // s, kw // s).
    taps = [((kh, kw), (kh % stride, kh // stride, kw % stride, kw // stride))
            for kh in range(3) for kw in range(3)]

    def channel_body(ci, carry):
        # Load + f32-cast every needed row window once per input channel;
        # shared across the 9 taps and the m outputs.
        rows = {}
        for (_, (ph, oh, pw, _)) in taps:
            key = (ph, oh, pw)
            if key not in rows:
                rows[key] = planes[ph * stride + pw][
                    0, ci, oh:oh + Ho, :].astype(jnp.float32)
        for j in range(m):
            co = ci * m + j
            wbase = (c0 + co) * 9
            acc = None
            for ((kh, kw), (ph, oh, pw, ow)) in taps:
                term = (rows[(ph, oh, pw)][:, ow:ow + Wo]
                        * w_ref[wbase + kh * 3 + kw])
                acc = term if acc is None else acc + term
            y = acc + b_ref[c0 + co]
            o_ref[0, co] = jnp.maximum(y, 0.0).astype(o_ref.dtype)
        return carry

    if tcin <= 2:
        for ci in range(tcin):
            channel_body(ci, 0)
    else:
        lax.fori_loop(0, tcin, channel_body, 0, unroll=2)


def dwconv_bn_relu(x_nchw, weight, gamma, beta, running_mean, running_var,
                   *, stride=1, eps=1e-5):
    """Forward pass of _DWConv (inference-mode BatchNorm).

    x_nchw : (N, Cin, H, W)
    weight : (Cout, 1, 3, 3)   groups=Cin, Cout = m*Cin
    gamma, beta, running_mean, running_var : (Cout,)
    Returns (N, Cout, Ho, Wo) in x's dtype (bf16 I/O supported; f32 accumulate).
    """
    N, Cin, H, W = x_nchw.shape
    Cout = weight.shape[0]
    assert Cout % Cin == 0, (Cout, Cin)
    m = Cout // Cin

    Ho = (H - 1) // stride + 1               # k=3, pad=1
    Wo = (W - 1) // stride + 1
    Hp, Wp = H + 2, W + 2
    itemsize = jnp.dtype(x_nchw.dtype).itemsize

    # Fold BN scale into the conv taps; only bias + ReLU run per output.
    scale = gamma.astype(jnp.float32) / jnp.sqrt(
        running_var.astype(jnp.float32) + eps)
    w_folded = (weight.astype(jnp.float32).reshape(Cout, 9)
                * scale[:, None]).reshape(-1)                     # (Cout*9,)
    bias = beta.astype(jnp.float32) - running_mean.astype(jnp.float32) * scale
    # NOTE: 1D SMEM pads to next_pow2(4N) bytes; fine for fast_scnn-sized Cout.

    # ---- halo-free channel tiling (bounds per-step VMEM) --------------------
    def step_bytes(tcin_):
        # Pallas double-buffers every pipelined in/out block (2x). The f32
        # accumulator lives in vregs, not VMEM, so it is not counted.
        if stride == 1:
            in_b = tcin_ * H * W * itemsize
            scratch_b = Hp * Wp * 4
        else:
            in_b = tcin_ * Hp * Wp * itemsize      # all stride^2 phase planes
            scratch_b = 0
        out_b = m * tcin_ * Ho * Wo * itemsize
        return 2 * (in_b + out_b) + scratch_b

    try:
        vmem_cap = int(pltpu.get_tpu_info().vmem_capacity_bytes)
    except Exception:
        vmem_cap = 64 * 1024 * 1024                # v7x physical VMEM (safe min)
    vmem_limit = min(vmem_cap // 2, 64 * 1024 * 1024)
    budget = min(12 * 1024 * 1024, vmem_limit // 2)

    divisors = [d for d in range(1, Cin + 1) if Cin % d == 0]
    fitting = [d for d in divisors if step_bytes(d) <= budget]
    tcin = max(fitting) if fitting else 1
    # Enough grid steps for pipeline depth and both v7x TensorCores.
    target_steps = 8
    while N * (Cin // tcin) < target_steps:
        smaller = [d for d in divisors if d < tcin]
        if not smaller:
            break
        tcin = max(smaller)
    tc = m * tcin
    vmem_limit = int(max(vmem_limit,
                         min(vmem_cap, step_bytes(tcin) + 4 * 1024 * 1024)))

    smem = pl.BlockSpec(memory_space=pltpu.MemorySpace.SMEM)

    if stride == 1:
        # Fully fused: no wrapper-side padding / rearrangement at all.
        kernel = functools.partial(_dwconv_s1_kernel, m=m, tcin=tcin)
        in_specs = [smem, smem,
                    pl.BlockSpec((1, tcin, H, W), lambda n, cb: (n, cb, 0, 0))]
        operands = (w_folded, bias, x_nchw)
        scratch_shapes = [pltpu.VMEM((Hp, Wp), jnp.float32)]
    else:
        # TODO(synk): fuse pad + phase decomposition into the kernel as well.
        xp = jnp.pad(x_nchw, ((0, 0), (0, 0), (1, 1), (1, 1)))
        planes = [xp[:, :, ph::stride, pw::stride]
                  for ph in range(stride) for pw in range(stride)]
        kernel = functools.partial(_dwconv_planes_kernel,
                                   stride=stride, m=m, tcin=tcin)
        in_specs = [smem, smem]
        for p in planes:
            ph_h, ph_w = p.shape[2], p.shape[3]
            in_specs.append(
                pl.BlockSpec((1, tcin, ph_h, ph_w),
                             lambda n, cb: (n, cb, 0, 0)))
        operands = (w_folded, bias, *planes)
        scratch_shapes = []

    out_nchw = pl.pallas_call(
        kernel,
        out_shape=jax.ShapeDtypeStruct((N, Cout, Ho, Wo), x_nchw.dtype),
        grid_spec=pltpu.PrefetchScalarGridSpec(
            num_scalar_prefetch=0,
            grid=(N, Cin // tcin),
            in_specs=in_specs,
            out_specs=pl.BlockSpec((1, tc, Ho, Wo), lambda n, cb: (n, cb, 0, 0)),
            scratch_shapes=scratch_shapes,
        ),
        compiler_params=pltpu.CompilerParams(
            dimension_semantics=("parallel", "parallel"),
            vmem_limit_bytes=vmem_limit,
        ),
    )(*operands)

    return out_nchw


def _reference(x_nchw, weight, gamma, beta, running_mean, running_var,
               *, stride=1, eps=1e-5):
    """Pure-JAX reference (lax grouped conv + inference BN + ReLU)."""
    Cin = x_nchw.shape[1]
    y = jax.lax.conv_general_dilated(
        x_nchw.astype(jnp.float32), weight.astype(jnp.float32),
        window_strides=(stride, stride), padding=((1, 1), (1, 1)),
        dimension_numbers=("NCHW", "OIHW", "NCHW"),
        feature_group_count=Cin)
    scale = gamma / jnp.sqrt(running_var + eps)
    bias = beta - running_mean * scale
    y = y * scale[None, :, None, None] + bias[None, :, None, None]
    return jnp.maximum(y, 0.0)


if __name__ == "__main__":
    key = jax.random.PRNGKey(0)

    def make_params(k, cout):
        ks = jax.random.split(k, 5)
        weight = jax.random.normal(ks[0], (cout, 1, 3, 3), jnp.float32) * 0.1
        gamma = jax.random.uniform(ks[1], (cout,), minval=0.5, maxval=1.5)
        beta = jax.random.normal(ks[2], (cout,)) * 0.1
        mean = jax.random.normal(ks[3], (cout,)) * 0.1
        var = jax.random.uniform(ks[4], (cout,), minval=0.5, maxval=1.5)
        return weight, gamma, beta, mean, var

    cases = [
        # name,          N, Cin, H,  W,  stride, mult, dtype,        atol
        ("stride1",      2,  4, 16, 16, 1,      1,    jnp.float32,  1e-4),
        ("stride2",      2,  4, 16, 16, 2,      1,    jnp.float32,  1e-4),
        ("mult2",        2,  4, 16, 16, 1,      2,    jnp.float32,  1e-4),
        ("c64_bf16",     1, 64,  8,  8, 1,      1,    jnp.bfloat16, 5e-2),
        ("c32_s2_bf16",  1, 32, 16, 16, 2,      1,    jnp.bfloat16, 5e-2),
    ]
    for i, (name, N, C, H, W, stride, mult, dtype, atol) in enumerate(cases):
        kx, kp = jax.random.split(jax.random.fold_in(key, i))
        x = jax.random.normal(kx, (N, C, H, W), jnp.float32).astype(dtype)
        weight, gamma, beta, mean, var = make_params(kp, mult * C)

        out = dwconv_bn_relu(x, weight, gamma, beta, mean, var, stride=stride)
        out = jax.block_until_ready(out)

        ref = _reference(x.astype(jnp.float32), weight, gamma, beta, mean, var,
                         stride=stride)
        assert out.shape == ref.shape, (name, out.shape, ref.shape)
        err = float(jnp.max(jnp.abs(out.astype(jnp.float32) - ref)))
        assert err <= atol, (name, err)

    print("KERNEL_OK")
</pallas_src>

<mosaic_0001>
module attributes {stable_mosaic.version = 11 : i64} {
  func.func @_dwconv_s1_kernel(%arg0: i32, %arg1: i32, %arg2: memref<36xf32, #tpu.memory_space<smem>>, %arg3: memref<4xf32, #tpu.memory_space<smem>>, %arg4: memref<1x1x16x16xf32, #tpu.memory_space<vmem>>, %arg5: memref<1x1x16x16xf32, #tpu.memory_space<vmem>>, %arg6: memref<18x18xf32, #tpu.memory_space<vmem>>) attributes {dimension_semantics = [#tpu.dimension_semantics<parallel>, #tpu.dimension_semantics<parallel>], iteration_bounds = array<i64: 2, 4>, scalar_prefetch = 0 : i64, scratch_operands = 1 : i64, tpu.core_type = #tpu.core_type<tc>, window_params = [{transform_indices = @transform_0, window_bounds = array<i64: 36>}, {transform_indices = @transform_1, window_bounds = array<i64: 4>}, {transform_indices = @transform_2, window_bounds = array<i64: 1, 1, 16, 16>}, {transform_indices = @transform_3, window_bounds = array<i64: 1, 1, 16, 16>}]} {
    %c1_i32 = arith.constant 1 : i32
    %0 = arith.muli %arg1, %c1_i32 : i32
    %cst = arith.constant 0.000000e+00 : f32
    %1 = vector.broadcast %cst : f32 to vector<1x18xf32>
    %c0 = arith.constant 0 : index
    %c0_0 = arith.constant 0 : index
    %2 = vector.load %arg6[%c0, %c0_0] : memref<18x18xf32, #tpu.memory_space<vmem>>, vector<1x18xf32>
    tpu.vector_store %arg6[%c0, %c0_0], %1 {strides = array<i32>} : memref<18x18xf32, #tpu.memory_space<vmem>>, vector<1x18xf32>,
    %c17 = arith.constant 17 : index
    %c0_1 = arith.constant 0 : index
    %3 = vector.load %arg6[%c17, %c0_1] : memref<18x18xf32, #tpu.memory_space<vmem>>, vector<1x18xf32>
    tpu.vector_store %arg6[%c17, %c0_1], %1 {strides = array<i32>} : memref<18x18xf32, #tpu.memory_space<vmem>>, vector<1x18xf32>,
    %cst_2 = arith.constant 0.000000e+00 : f32
    %4 = vector.broadcast %cst_2 : f32 to vector<18x1xf32>
    %c0_3 = arith.constant 0 : index
    %c0_4 = arith.constant 0 : index
    %5 = vector.load %arg6[%c0_3, %c0_4] : memref<18x18xf32, #tpu.memory_space<vmem>>, vector<18x1xf32>
    tpu.vector_store %arg6[%c0_3, %c0_4], %4 {strides = array<i32>} : memref<18x18xf32, #tpu.memory_space<vmem>>, vector<18x1xf32>,
    %c0_5 = arith.constant 0 : index
    %c17_6 = arith.constant 17 : index
    %6 = vector.load %arg6[%c0_5, %c17_6] : memref<18x18xf32, #tpu.memory_space<vmem>>, vector<18x1xf32>
    tpu.vector_store %arg6[%c0_5, %c17_6], %4 {strides = array<i32>} : memref<18x18xf32, #tpu.memory_space<vmem>>, vector<18x1xf32>,
    %c0_7 = arith.constant 0 : index
    %c0_8 = arith.constant 0 : index
    %c0_9 = arith.constant 0 : index
    %c0_10 = arith.constant 0 : index
    %7 = vector.load %arg4[%c0_7, %c0_8, %c0_9, %c0_10] : memref<1x1x16x16xf32, #tpu.memory_space<vmem>>, vector<1x1x16x16xf32>
    %8 = vector.shape_cast %7 : vector<1x1x16x16xf32> to vector<16x16xf32>
    %c1 = arith.constant 1 : index
    %c1_11 = arith.constant 1 : index
    %9 = vector.load %arg6[%c1, %c1_11] : memref<18x18xf32, #tpu.memory_space<vmem>>, vector<16x16xf32>
    tpu.vector_store %arg6[%c1, %c1_11], %8 {strides = array<i32>} : memref<18x18xf32, #tpu.memory_space<vmem>>, vector<16x16xf32>,
    %c0_12 = arith.constant 0 : index
    %c0_13 = arith.constant 0 : index
    %10 = vector.load %arg6[%c0_12, %c0_13] : memref<18x18xf32, #tpu.memory_space<vmem>>, vector<16x18xf32>
    %c1_14 = arith.constant 1 : index
    %c0_15 = arith.constant 0 : index
    %11 = vector.load %arg6[%c1_14, %c0_15] : memref<18x18xf32, #tpu.memory_space<vmem>>, vector<16x18xf32>
    %c2 = arith.constant 2 : index
    %c0_16 = arith.constant 0 : index
    %12 = vector.load %arg6[%c2, %c0_16] : memref<18x18xf32, #tpu.memory_space<vmem>>, vector<16x18xf32>
    %c0_i32 = arith.constant 0 : i32
    %13 = arith.addi %0, %c0_i32 : i32
    %c9_i32 = arith.constant 9 : i32
    %14 = arith.muli %13, %c9_i32 : i32
    %15 = vector.extract_strided_slice %10 {offsets = [0, 0], sizes = [16, 16], strides = [1, 1]} : vector<16x18xf32> to vector<16x16xf32>
    %c0_i32_17 = arith.constant 0 : i32
    %16 = arith.addi %14, %c0_i32_17 : i32
    %c0_i32_18 = arith.constant 0 : i32
    %17 = arith.addi %16, %c0_i32_18 : i32
    %18 = arith.index_cast %17 : i32 to index
    %19 = memref.load %arg2[%18] : memref<36xf32, #tpu.memory_space<smem>>
    %20 = vector.broadcast %19 : f32 to vector<16x16xf32>
    %21 = arith.mulf %15, %20 : vector<16x16xf32>
    %22 = vector.extract_strided_slice %10 {offsets = [0, 1], sizes = [16, 16], strides = [1, 1]} : vector<16x18xf32> to vector<16x16xf32>
    %c0_i32_19 = arith.constant 0 : i32
    %23 = arith.addi %14, %c0_i32_19 : i32
    %c1_i32_20 = arith.constant 1 : i32
    %24 = arith.addi %23, %c1_i32_20 : i32
    %25 = arith.index_cast %24 : i32 to index
    %26 = memref.load %arg2[%25] : memref<36xf32, #tpu.memory_space<smem>>
    %27 = vector.broadcast %26 : f32 to vector<16x16xf32>
    %28 = arith.mulf %22, %27 : vector<16x16xf32>
    %29 = arith.addf %21, %28 : vector<16x16xf32>
    %30 = vector.extract_strided_slice %10 {offsets = [0, 2], sizes = [16, 16], strides = [1, 1]} : vector<16x18xf32> to vector<16x16xf32>
    %c0_i32_21 = arith.constant 0 : i32
    %31 = arith.addi %14, %c0_i32_21 : i32
    %c2_i32 = arith.constant 2 : i32
    %32 = arith.addi %31, %c2_i32 : i32
    %33 = arith.index_cast %32 : i32 to index
    %34 = memref.load %arg2[%33] : memref<36xf32, #tpu.memory_space<smem>>
    %35 = vector.broadcast %34 : f32 to vector<16x16xf32>
    %36 = arith.mulf %30, %35 : vector<16x16xf32>
    %37 = arith.addf %29, %36 : vector<16x16xf32>
    %38 = vector.extract_strided_slice %11 {offsets = [0, 0], sizes = [16, 16], strides = [1, 1]} : vector<16x18xf32> to vector<16x16xf32>
    %c3_i32 = arith.constant 3 : i32
    %39 = arith.addi %14, %c3_i32 : i32
    %c0_i32_22 = arith.constant 0 : i32
    %40 = arith.addi %39, %c0_i32_22 : i32
    %41 = arith.index_cast %40 : i32 to index
    %42 = memref.load %arg2[%41] : memref<36xf32, #tpu.memory_space<smem>>
    %43 = vector.broadcast %42 : f32 to vector<16x16xf32>
    %44 = arith.mulf %38, %43 : vector<16x16xf32>
    %45 = arith.addf %37, %44 : vector<16x16xf32>
    %46 = vector.extract_strided_slice %11 {offsets = [0, 1], sizes = [16, 16], strides = [1, 1]} : vector<16x18xf32> to vector<16x16xf32>
    %c3_i32_23 = arith.constant 3 : i32
    %47 = arith.addi %14, %c3_i32_23 : i32
    %c1_i32_24 = arith.constant 1 : i32
    %48 = arith.addi %47, %c1_i32_24 : i32
    %49 = arith.index_cast %48 : i32 to index
    %50 = memref.load %arg2[%49] : memref<36xf32, #tpu.memory_space<smem>>
    %51 = vector.broadcast %50 : f32 to vector<16x16xf32>
    %52 = arith.mulf %46, %51 : vector<16x16xf32>
    %53 = arith.addf %45, %52 : vector<16x16xf32>
    %54 = vector.extract_strided_slice %11 {offsets = [0, 2], sizes = [16, 16], strides = [1, 1]} : vector<16x18xf32> to vector<16x16xf32>
    %c3_i32_25 = arith.constant 3 : i32
    %55 = arith.addi %14, %c3_i32_25 : i32
    %c2_i32_26 = arith.constant 2 : i32
    %56 = arith.addi %55, %c2_i32_26 : i32
    %57 = arith.index_cast %56 : i32 to index
    %58 = memref.load %arg2[%57] : memref<36xf32, #tpu.memory_space<smem>>
    %59 = vector.broadcast %58 : f32 to vector<16x16xf32>
    %60 = arith.mulf %54, %59 : vector<16x16xf32>
    %61 = arith.addf %53, %60 : vector<16x16xf32>
    %62 = vector.extract_strided_slice %12 {offsets = [0, 0], sizes = [16, 16], strides = [1, 1]} : vector<16x18xf32> to vector<16x16xf32>
    %c6_i32 = arith.constant 6 : i32
    %63 = arith.addi %14, %c6_i32 : i32
    %c0_i32_27 = arith.constant 0 : i32
    %64 = arith.addi %63, %c0_i32_27 : i32
    %65 = arith.index_cast %64 : i32 to index
    %66 = memref.load %arg2[%65] : memref<36xf32, #tpu.memory_space<smem>>
    %67 = vector.broadcast %66 : f32 to vector<16x16xf32>
    %68 = arith.mulf %62, %67 : vector<16x16xf32>
    %69 = arith.addf %61, %68 : vector<16x16xf32>
    %70 = vector.extract_strided_slice %12 {offsets = [0, 1], sizes = [16, 16], strides = [1, 1]} : vector<16x18xf32> to vector<16x16xf32>
    %c6_i32_28 = arith.constant 6 : i32
    %71 = arith.addi %14, %c6_i32_28 : i32
    %c1_i32_29 = arith.constant 1 : i32
    %72 = arith.addi %71, %c1_i32_29 : i32
    %73 = arith.index_cast %72 : i32 to index
    %74 = memref.load %arg2[%73] : memref<36xf32, #tpu.memory_space<smem>>
    %75 = vector.broadcast %74 : f32 to vector<16x16xf32>
    %76 = arith.mulf %70, %75 : vector<16x16xf32>
    %77 = arith.addf %69, %76 : vector<16x16xf32>
    %78 = vector.extract_strided_slice %12 {offsets = [0, 2], sizes = [16, 16], strides = [1, 1]} : vector<16x18xf32> to vector<16x16xf32>
    %c6_i32_30 = arith.constant 6 : i32
    %79 = arith.addi %14, %c6_i32_30 : i32
    %c2_i32_31 = arith.constant 2 : i32
    %80 = arith.addi %79, %c2_i32_31 : i32
    %81 = arith.index_cast %80 : i32 to index
    %82 = memref.load %arg2[%81] : memref<36xf32, #tpu.memory_space<smem>>
    %83 = vector.broadcast %82 : f32 to vector<16x16xf32>
    %84 = arith.mulf %78, %83 : vector<16x16xf32>
    %85 = arith.addf %77, %84 : vector<16x16xf32>
    %c0_i32_32 = arith.constant 0 : i32
    %86 = arith.addi %0, %c0_i32_32 : i32
    %87 = arith.index_cast %86 : i32 to index
    %88 = memref.load %arg3[%87] : memref<4xf32, #tpu.memory_space<smem>>
    %89 = vector.broadcast %88 : f32 to vector<16x16xf32>
    %90 = arith.addf %85, %89 : vector<16x16xf32>
    %cst_33 = arith.constant 0.000000e+00 : f32
    %91 = vector.broadcast %cst_33 : f32 to vector<16x16xf32>
    %92 = arith.maximumf %90, %91 : vector<16x16xf32>
    %c0_34 = arith.constant 0 : index
    %c0_35 = arith.constant 0 : index
    %c0_36 = arith.constant 0 : index
    %c0_37 = arith.constant 0 : index
    %93 = vector.load %arg5[%c0_34, %c0_35, %c0_36, %c0_37] : memref<1x1x16x16xf32, #tpu.memory_space<vmem>>, vector<1x1x16x16xf32>
    %94 = vector.shape_cast %93 : vector<1x1x16x16xf32> to vector<16x16xf32>
    %95 = vector.shape_cast %92 : vector<16x16xf32> to vector<1x1x16x16xf32>
    tpu.vector_store %arg5[%c0_34, %c0_35, %c0_36, %c0_37], %95 {strides = array<i32>} : memref<1x1x16x16xf32, #tpu.memory_space<vmem>>, vector<1x1x16x16xf32>,
    return
  }
  func.func @transform_0(%arg0: i32, %arg1: i32) -> i32 {
    %c0_i32 = arith.constant 0 : i32
    %c0_i32_0 = arith.constant 0 : i32
    return %c0_i32 : i32
  }
  func.func @transform_1(%arg0: i32, %arg1: i32) -> i32 {
    %c0_i32 = arith.constant 0 : i32
    %c0_i32_0 = arith.constant 0 : i32
    return %c0_i32 : i32
  }
  func.func @transform_2(%arg0: i32, %arg1: i32) -> (i32, i32, i32, i32) {
    %c0_i32 = arith.constant 0 : i32
    %c0_i32_0 = arith.constant 0 : i32
    %c0_i32_1 = arith.constant 0 : i32
    return %arg0, %arg1, %c0_i32, %c0_i32_0 : i32, i32, i32, i32
  }
  func.func @transform_3(%arg0: i32, %arg1: i32) -> (i32, i32, i32, i32) {
    %c0_i32 = arith.constant 0 : i32
    %c0_i32_0 = arith.constant 0 : i32
    %c0_i32_1 = arith.constant 0 : i32
    return %arg0, %arg1, %c0_i32, %c0_i32_0 : i32, i32, i32, i32
  }
}

</mosaic_0001>

<llo_original>
// kernel: tpu_custom_call.1
$region0: #{tpu_custom_call.1}
  #allocation0 [shape = 'u32[]', space=smem, size = 0x4, offset = 0x4, fixed_abs, tag = 'smem constant byte address 0x4 - core index']
  #allocation1 [shape = 'u32[144,128]{1,0:T(1,128)}', space=vmem, size = 0x12000, scoped, tag = 'internal scratch']
  #allocation2 [shape = 'f32[18,18]{1,0:T(8,128)}', space=vmem, size = 0x3000, scoped, tag = 'scratch operand']
  %s0 = inlined_call_operand.hbm [shape: f32[36], index: 0, kind: input, shape index: {}]
  %s1 = inlined_call_operand.vmem [shape: f32[4], index: 1, kind: input, shape index: {}]
  %s2 = inlined_call_operand.hbm [shape: f32[2,4,16,16], index: 2, kind: input, shape index: {}]
  %s3 = inlined_call_operand.hbm [shape: f32[2,4,16,16], index: 3, kind: output, shape index: {}]
  %s4 = sld [smem:[#allocation0]]
  $region57: #{tpu_custom_call.1} parent=0
    _
  %s6 = ssub.s32 1, %s4
  %s7 = scalar_select 0, %s6, %s4
  $region1: #{tpu_custom_call.1} parent=0
    #allocation3 [shape = 'u8[512]{0}', space=smem, size = 0x200, scoped, tag = 'input window, operand 0, single buffered']
    #allocation4 [shape = 's32[2]{0}', space=sflag, size = 0x8, scoped, tag = 'scoped memory for tpu_custom_call.1']
    #allocation5 [shape = 's32[2]{0}', space=sflag, size = 0x8, scoped, tag = 'scoped memory for tpu_custom_call.1']
    #allocation6 [shape = 's32[2]{0}', space=sflag, size = 0x8, scoped, tag = 'scoped memory for tpu_custom_call.1']
    #allocation7 [shape = 's32[2]{0}', space=sflag, size = 0x8, scoped, tag = 'scoped memory for tpu_custom_call.1']
    #allocation8 [shape = 'u8[512]{0}', space=smem, size = 0x200, scoped, tag = 'input window, operand 1, single buffered']
    #allocation9 [shape = 'u8[16384]{0}', space=vmem, size = 0x4000, scoped, tag = 'input window, operand 2']
    #allocation10 [shape = 'u8[16384]{0}', space=vmem, size = 0x4000, scoped, tag = 'output window, operand 0']
    %8 = vsyncpa [#allocation6], 0
    %9 = vsyncpa [#allocation7], 0
    %10 = vsyncpa [#allocation4], 0
    %s11 = scalar_lea.sflag [#allocation4], 1
    %12 = vsyncpa %s11, 0
    %13 = vsyncpa [#allocation5], 0
    %s14 = scalar_lea.sflag [#allocation5], 1
    %15 = vsyncpa %s14, 0
    loop: start=0, step=1, limit=10
    $region2: #{tpu_custom_call.1} parent=1 // loop_pre_header
      _
    $region3: #{tpu_custom_call.1} parent=1 // loop_header
      %s17 = sphi 0, %s21
      %p18 = scmp.ge.s32.totalorder %s17, 10
      %s24 = sphi 0, %s36
      %s25 = sphi 0, %s32
      %s26 = sphi 0, %s24
      %s27 = sphi 0, %s25
      %s28 = sphi 0, %s26
      %s29 = sphi 0, %s27
      %s37 = sphi 0, %s37
      %s39 = sphi 0, %s37
      %s40 = sphi 0, %s39
      %s54 = sphi 0, %s40
      %s58 = sphi 0, %s58
      %s60 = sphi 0, %s58
      %s61 = sphi 0, %s60
      %s75 = sphi 0, %s61
      %s83 = sphi 0, %s85
      %s86 = sphi 0, %s83
      %s87 = sphi 0, %s86
      %s103 = sphi 0, %s87
      %s111 = sphi 0, %s113
      %s114 = sphi 0, %s111
      %s115 = sphi 0, %s114
      %s131 = sphi 0, %s115
    $region4: #{tpu_custom_call.1} parent=1 // loop_header_branch
      %20 = sbr.rel (%p18) target = $region8
    $region5: #{tpu_custom_call.1} parent=1 // loop_body
      %s22 = ssub.s32 %s17, 1
      %s23 = ssub.s32 %s17, 2
      %s30 = sadd.s32 1, %s25
      %p31 = scmp.ge.s32.totalorder %s30, 4
      %s32 = scalar_select %p31, 0, %s30
      %s33 = sadd.s32 1, %s24
      %s34 = scalar_select %p31, %s33, %s24
      %p35 = scmp.ge.s32.totalorder %s34, 2
      %s36 = scalar_select %p35, 0, %s34
      %s38 = sadd.s32 %s37, 1
      %p41 = scmp.eq.s32.totalorder %s17, 7
      %p42 = scmp.ne.s32.totalorder %s37, %s39
      %p43 = scmp.eq.s32.totalorder %s17, 0
      %p44 = por %p42, %p43
      %p45 = scmp.ne.s32.totalorder %s37, %s39
      %p46 = scmp.eq.s32.totalorder %s22, 7
      %p47 = por %p45, %p46
      %p48 = scmp.ne.s32.totalorder %s39, %s40
      %p49 = scmp.eq.s32.totalorder %s22, 0
      %p50 = por %p48, %p49
      %p51 = scmp.ne.s32.totalorder %s39, %s40
      %p52 = scmp.eq.s32.totalorder %s23, 7
      %p53 = por %p51, %p52
      %p55 = scmp.ne.s32.totalorder %s40, %s54
      %p56 = scmp.eq.s32.totalorder %s23, 0
      %p57 = por %p55, %p56
      %s59 = sadd.s32 %s58, 1
      %p62 = scmp.eq.s32.totalorder %s17, 7
      %p63 = scmp.ne.s32.totalorder %s58, %s60
      %p64 = scmp.eq.s32.totalorder %s17, 0
      %p65 = por %p63, %p64
      %p66 = scmp.ne.s32.totalorder %s58, %s60
      %p67 = scmp.eq.s32.totalorder %s22, 7
      %p68 = por %p66, %p67
      %p69 = scmp.ne.s32.totalorder %s60, %s61
      %p70 = scmp.eq.s32.totalorder %s22, 0
      %p71 = por %p69, %p70
      %p72 = scmp.ne.s32.totalorder %s60, %s61
      %p73 = scmp.eq.s32.totalorder %s23, 7
      %p74 = por %p72, %p73
      %p76 = scmp.ne.s32.totalorder %s61, %s75
      %p77 = scmp.eq.s32.totalorder %s23, 0
      %p78 = por %p76, %p77
      %s79 = ssub.s32 %s24, %s36
      %s80 = ssub.s32 %s25, %s32
      %s81 = sor.u32 %s79, %s80
      %p82 = scmp.eq.s32.totalorder %s81, 0
      %s84 = sadd.s32 %s83, 1
      %s85 = scalar_select %p82, %s83, %s84
      %p88 = pneg %p82
      %p89 = scmp.eq.s32.totalorder %s17, 7
      %p90 = por %p88, %p89
      %p91 = scmp.ne.s32.totalorder %s83, %s86
      %p92 = scmp.eq.s32.totalorder %s17, 0
      %p93 = por %p91, %p92
      %p94 = scmp.ne.s32.totalorder %s83, %s86
      %p95 = scmp.eq.s32.totalorder %s22, 7
      %p96 = por %p94, %p95
      %p97 = scmp.ne.s32.totalorder %s86, %s87
      %p98 = scmp.eq.s32.totalorder %s22, 0
      %p99 = por %p97, %p98
      %p100 = scmp.ne.s32.totalorder %s86, %s87
      %p101 = scmp.eq.s32.totalorder %s23, 7
      %p102 = por %p100, %p101
      %p104 = scmp.ne.s32.totalorder %s87, %s103
      %p105 = scmp.eq.s32.totalorder %s23, 0
      %p106 = por %p104, %p105
      %s107 = ssub.s32 %s24, %s36
      %s108 = ssub.s32 %s25, %s32
      %s109 = sor.u32 %s107, %s108
      %p110 = scmp.eq.s32.totalorder %s109, 0
      %s112 = sadd.s32 %s111, 1
      %s113 = scalar_select %p110, %s111, %s112
      %p116 = pneg %p110
      %p117 = scmp.eq.s32.totalorder %s17, 7
      %p118 = por %p116, %p117
      %p119 = scmp.ne.s32.totalorder %s111, %s114
      %p120 = scmp.eq.s32.totalorder %s17, 0
      %p121 = por %p119, %p120
      %p122 = scmp.ne.s32.totalorder %s111, %s114
      %p123 = scmp.eq.s32.totalorder %s22, 7
      %p124 = por %p122, %p123
      %p125 = scmp.ne.s32.totalorder %s114, %s115
      %p126 = scmp.eq.s32.totalorder %s22, 0
      %p127 = por %p125, %p126
      %p128 = scmp.ne.s32.totalorder %s114, %s115
      %p129 = scmp.eq.s32.totalorder %s23, 7
      %p130 = por %p128, %p129
      %p132 = scmp.ne.s32.totalorder %s115, %s131
      %p133 = scmp.eq.s32.totalorder %s23, 0
      %p134 = por %p132, %p133
      %p135 = scmp.le.s32.totalorder 1, %s17
      %p136 = scmp.lt.s32.totalorder %s17, 9
      %p137 = pnand %p135, %p136
      %p138 = pneg %p137
      // Predicated region
      $region9: #{tpu_custom_call.1} parent=5 // pred_check
        _
      $region10: #{tpu_custom_call.1} parent=5 // pred_check_branch
        %140 = sbr.rel (%p137) target = $region12
      $region11: #{tpu_custom_call.1} parent=5 // pred_region
        %s141 = ssub.s32 %s17, 1
        // Predicated region
        $region13: #{tpu_custom_call.1} parent=11 // pred_check
          %p142 = pneg %p50
        $region14: #{tpu_custom_call.1} parent=11 // pred_check_branch
          %144 = sbr.rel (%p142) target = $region16
        $region15: #{tpu_custom_call.1} parent=11 // pred_region
          %s146 = ssub.s32 16, 16
          %147 = vsyncadd [#allocation6], %s146
          %150 = dma.hbm_to_smem %s0, 16, [#allocation3], [#allocation6]
        $region16: #{tpu_custom_call.1} parent=11 // pred_fallthru
          _
        // Predicated region
        $region17: #{tpu_custom_call.1} parent=11 // pred_check
          %p151 = pneg %p71
        $region18: #{tpu_custom_call.1} parent=11 // pred_check_branch
          %153 = sbr.rel (%p151) target = $region20
        $region19: #{tpu_custom_call.1} parent=11 // pred_region
          %s155 = ssub.s32 16, 16
          %156 = vsyncadd [#allocation7], %s155
          %s158 = sshll.u32 %s1, 4
          %s159 = int_to_ptr.vmem [resolvable:$true] %s158
          %161 = dma.vmem_to_smem %s159, 16, [#allocation8], [#allocation7]
        $region20: #{tpu_custom_call.1} parent=11 // pred_fallthru
          _
      $region12: #{tpu_custom_call.1} parent=5 // pred_fallthru
        _
      %p162 = scmp.lt.s32.totalorder %s17, 8
      // Predicated region
      $region21: #{tpu_custom_call.1} parent=5 // pred_check
        %p163 = pneg %p162
      $region22: #{tpu_custom_call.1} parent=5 // pred_check_branch
        %165 = sbr.rel (%p163) target = $region24
      $region23: #{tpu_custom_call.1} parent=5 // pred_region
        // Predicated region
        $region25: #{tpu_custom_call.1} parent=23 // pred_check
          %p166 = pneg %p93
        $region26: #{tpu_custom_call.1} parent=23 // pred_check_branch
          %168 = sbr.rel (%p166) target = $region28
        $region27: #{tpu_custom_call.1} parent=23 // pred_region
          %s169 = sand.u32 %s83, 1
          %s170 = scalar_lea.sflag [#allocation4], %s169
          %s171 = sand.u32 %s83, 1
          %s172 = smul.addr %s171, 16
          %s173 = scalar_lea.vmem [#allocation9], %s172
          %s175 = ssub.s32 256, 256
          %176 = vsyncadd %s170, %s175
          %s177 = smul.addr %s25, 2
          %s178 = smul.addr %s24, 8
          %s179 = sadd.s32 %s177, %s178
          %s180 = smul.addr %s179, 128
          %s181 = scalar_lea.hbm %s2, %s180
          %s182 = sshll.u32 %s173, 4
          %s183 = int_to_ptr.vmem [resolvable:$true] %s182
          %188 = dma.hbm_to_vmem [thread:$0]  %s181, 256, %s183, %s170, 128, 128, 8
        $region28: #{tpu_custom_call.1} parent=23 // pred_fallthru
          _
      $region24: #{tpu_custom_call.1} parent=5 // pred_fallthru
        _
      %p189 = scmp.le.s32.totalorder 1, %s17
      %p190 = scmp.lt.s32.totalorder %s17, 9
      %p191 = pnand %p189, %p190
      %p192 = pneg %p191
      // Predicated region
      $region29: #{tpu_custom_call.1} parent=5 // pred_check
        _
      $region30: #{tpu_custom_call.1} parent=5 // pred_check_branch
        %194 = sbr.rel (%p191) target = $region32
      $region31: #{tpu_custom_call.1} parent=5 // pred_region
        %s195 = ssub.s32 %s17, 1
        // Predicated region
        $region33: #{tpu_custom_call.1} parent=31 // pred_check
          %p196 = pneg %p50
        $region34: #{tpu_custom_call.1} parent=31 // pred_check_branch
          %198 = sbr.rel (%p196) target = $region36
        $region35: #{tpu_custom_call.1} parent=31 // pred_region
          %199 = dma.done [#allocation6], 16
        $region36: #{tpu_custom_call.1} parent=31 // pred_fallthru
          _
        // Predicated region
        $region37: #{tpu_custom_call.1} parent=31 // pred_check
          %p200 = pneg %p71
        $region38: #{tpu_custom_call.1} parent=31 // pred_check_branch
          %202 = sbr.rel (%p200) target = $region40
        $region39: #{tpu_custom_call.1} parent=31 // pred_region
          %203 = dma.done [#allocation7], 16
        $region40: #{tpu_custom_call.1} parent=31 // pred_fallthru
          _
        %s204 = sand.u32 %s86, 1
        %s205 = scalar_lea.sflag [#allocation4], %s204
        %s206 = sand.u32 %s86, 1
        %s207 = smul.addr %s206, 16
        %s208 = scalar_lea.vmem [#allocation9], %s207
        // Predicated region
        $region41: #{tpu_custom_call.1} parent=31 // pred_check
          %p209 = pneg %p99
        $region42: #{tpu_custom_call.1} parent=31 // pred_check_branch
          %211 = sbr.rel (%p209) target = $region44
        $region43: #{tpu_custom_call.1} parent=31 // pred_region
          %212 = dma.done %s205, 256
        $region44: #{tpu_custom_call.1} parent=31 // pred_fallthru
          _
        %213 = sfence
        %p214 = pneg %p50
        %p215 = pneg %p47
        %p216 = pneg %p71
        %p217 = pneg %p68
        %s218 = sand.u32 %s86, 1
        %s219 = scalar_lea.sflag [#allocation4], %s218
        %s220 = sand.u32 %s86, 1
        %s221 = smul.addr %s220, 16
        %s222 = scalar_lea.vmem [#allocation9], %s221
        %p223 = pneg %p99
        %p224 = pneg %p96
        %p225 = pneg %p127
        %p226 = pneg %p124
        %s227 = sand.u32 %s114, 1
        %s228 = scalar_lea.sflag [#allocation5], %s227
        %s229 = sand.u32 %s114, 1
        %s230 = smul.addr %s229, 16
        %s231 = scalar_lea.vmem [#allocation10], %s230
        %vm232 = vcmask 139264
        %233 = vst.msk [vmem:[#allocation2] sm:$0x1] %vm232, 0.0
        %234 = vst.msk [vmem:[#allocation2 + $0x11] sm:$0x1] %vm232, 0.0
        %vm235 = vcmask 7168
        %236 = vst.msk [vmem:[#allocation2] sm:$0xff] %vm235, 0.0
        %237 = vst.msk [vmem:[#allocation2 + $0x8] sm:$0xff] %vm235, 0.0
        %vm238 = vcmask 1024
        %239 = vst.msk [vmem:[#allocation2 + $0x10] sm:$0x3] %vm238, 0.0
        %vm240 = vcmask 146568
        %241 = vst.msk [vmem:[#allocation2] sm:$0xff] %vm240, 0.0
        %242 = vst.msk [vmem:[#allocation2 + $0x8] sm:$0xff] %vm240, 0.0
        %vm243 = vcmask 140424
        %244 = vst.msk [vmem:[#allocation2 + $0x10] sm:$0x3] %vm243, 0.0
        %v245 = vld [vmem:[%s208] sm:$0xff]
        %v246 = vld [vmem:[%s208 + $0x8] sm:$0xff]
        %249 = vrot.lane.b32.xlu0 %v245, 1
        %v250 = vpop.permute.xlu0 %249
        %251 = vrot.lane.b32.xlu0 %v246, 1
        %v252 = vpop.permute.xlu0 %251
        %vm255 = vcmask 138248
        %256 = vst.msk [vmem:[#allocation2 + $0x1] sm:$0xff] %vm255, %v250
        %257 = vst.msk [vmem:[#allocation2 + $0x9] sm:$0xff] %vm255, %v252
        %v258 = vld [vmem:[#allocation2] sm:$0xff]
        %v259 = vld [vmem:[#allocation2 + $0x8] sm:$0xff]
        %v260 = vld [vmem:[#allocation2 + $0x1] sm:$0xff]
        %v261 = vld [vmem:[#allocation2 + $0x9] sm:$0xff]
        %v262 = vld [vmem:[#allocation2 + $0x2] sm:$0xff]
        %v263 = vld [vmem:[#allocation2 + $0xa] sm:$0xff]
        %s264 = smul.u32 %s27, 9
        %s265 = sld [smem:[#allocation3 + %s264]]
        %v266 = vstv %s265
        %v267 = vmul.f32 %v258, %v266
        %v268 = vmul.f32 %v259, %v266
        %s269 = sadd.s32 %s264, 1
        %s270 = sld [smem:[#allocation3 + %s269]]
        %v271 = vstv %s270
        %v272 = vmul.f32 %v258, %v271
        %v273 = vmul.f32 %v259, %v271
        %276 = vrot.lane.b32.xlu0 %v272, 127
        %v277 = vpop.permute.xlu0 %276
        %278 = vrot.lane.b32.xlu0 %v273, 127
        %v279 = vpop.permute.xlu0 %278
        %v282 = vadd.f32 %v267, %v277
        %v283 = vadd.f32 %v268, %v279
        %s284 = sadd.s32 %s264, 2
        %s285 = sld [smem:[#allocation3 + %s284]]
        %v286 = vstv %s285
        %v287 = vmul.f32 %v258, %v286
        %v288 = vmul.f32 %v259, %v286
        %291 = vrot.lane.b32.xlu0 %v287, 126
        %v292 = vpop.permute.xlu0 %291
        %293 = vrot.lane.b32.xlu0 %v288, 126
        %v294 = vpop.permute.xlu0 %293
        %v297 = vadd.f32 %v282, %v292
        %v298 = vadd.f32 %v283, %v294
        %s299 = sadd.s32 %s264, 3
        %s300 = sld [smem:[#allocation3 + %s299]]
        %v301 = vstv %s300
        %v302 = vmul.f32 %v260, %v301
        %v303 = vmul.f32 %v261, %v301
        %v304 = vadd.f32 %v297, %v302
        %v305 = vadd.f32 %v298, %v303
        %s306 = sadd.s32 %s264, 4
        %s307 = sld [smem:[#allocation3 + %s306]]
        %v308 = vstv %s307
        %v309 = vmul.f32 %v260, %v308
        %v310 = vmul.f32 %v261, %v308
        %313 = vrot.lane.b32.xlu0 %v309, 127
        %v314 = vpop.permute.xlu0 %313
        %315 = vrot.lane.b32.xlu0 %v310, 127
        %v316 = vpop.permute.xlu0 %315
        %v319 = vadd.f32 %v304, %v314
        %v320 = vadd.f32 %v305, %v316
        %s321 = sadd.s32 %s264, 5
        %s322 = sld [smem:[#allocation3 + %s321]]
        %v323 = vstv %s322
        %v324 = vmul.f32 %v260, %v323
        %v325 = vmul.f32 %v261, %v323
        %328 = vrot.lane.b32.xlu0 %v324, 126
        %v329 = vpop.permute.xlu0 %328
        %330 = vrot.lane.b32.xlu0 %v325, 126
        %v331 = vpop.permute.xlu0 %330
        %v334 = vadd.f32 %v319, %v329
        %v335 = vadd.f32 %v320, %v331
        %s336 = sadd.s32 %s264, 6
        %s337 = sld [smem:[#allocation3 + %s336]]
        %v338 = vstv %s337
        %v339 = vmul.f32 %v262, %v338
        %v340 = vmul.f32 %v263, %v338
        %v341 = vadd.f32 %v334, %v339
        %v342 = vadd.f32 %v335, %v340
        %s343 = sadd.s32 %s264, 7
        %s344 = sld [smem:[#allocation3 + %s343]]
        %v345 = vstv %s344
        %v346 = vmul.f32 %v262, %v345
        %v347 = vmul.f32 %v263, %v345
        %350 = vrot.lane.b32.xlu0 %v346, 127
        %v351 = vpop.permute.xlu0 %350
        %352 = vrot.lane.b32.xlu0 %v347, 127
        %v353 = vpop.permute.xlu0 %352
        %v356 = vadd.f32 %v341, %v351
        %v357 = vadd.f32 %v342, %v353
        %s358 = sadd.s32 %s264, 8
        %s359 = sld [smem:[#allocation3 + %s358]]
        %v360 = vstv %s359
        %v361 = vmul.f32 %v262, %v360
        %v362 = vmul.f32 %v263, %v360
        %365 = vrot.lane.b32.xlu0 %v361, 126
        %v366 = vpop.permute.xlu0 %365
        %367 = vrot.lane.b32.xlu0 %v362, 126
        %v368 = vpop.permute.xlu0 %367
        %v371 = vadd.f32 %v356, %v366
        %v372 = vadd.f32 %v357, %v368
        %s373 = sld [smem:[#allocation8 + %s27]]
        %v374 = vstv %s373
        %v375 = vadd.f32 %v371, %v374
        %v376 = vadd.f32 %v372, %v374
        %v377 = vmax.f32 %v375, 0.0
        %v378 = vmax.f32 %v376, 0.0
        %vm379 = vcmask 130048
        %380 = vst.msk [vmem:[%s231] sm:$0xff] %vm379, %v377
        %381 = vst.msk [vmem:[%s231 + $0x8] sm:$0xff] %vm379, %v378
        %s382 = sand.u32 %s114, 1
        %s383 = scalar_lea.sflag [#allocation5], %s382
        %s384 = sand.u32 %s114, 1
        %s385 = smul.addr %s384, 16
        %s386 = scalar_lea.vmem [#allocation10], %s385
        // Predicated region
        $region45: #{tpu_custom_call.1} parent=31 // pred_check
          %p387 = pneg %p124
        $region46: #{tpu_custom_call.1} parent=31 // pred_check_branch
          %389 = sbr.rel (%p387) target = $region48
        $region47: #{tpu_custom_call.1} parent=31 // pred_region
          %s391 = ssub.s32 256, 256
          %392 = vsyncadd %s383, %s391
          %s393 = smul.addr %s27, 2
          %s394 = smul.addr %s26, 8
          %s395 = sadd.s32 %s393, %s394
          %s396 = smul.addr %s395, 128
          %s397 = scalar_lea.hbm %s3, %s396
          %s398 = sshll.u32 %s386, 4
          %s399 = int_to_ptr.vmem [resolvable:$true] %s398
          %404 = dma.vmem_to_hbm [thread:$0]  %s399, 256, %s397, %s383, 128, 128, 8
        $region48: #{tpu_custom_call.1} parent=31 // pred_fallthru
          _
      $region32: #{tpu_custom_call.1} parent=5 // pred_fallthru
        _
      %p405 = scmp.le.s32.totalorder 2, %s17
      // Predicated region
      $region49: #{tpu_custom_call.1} parent=5 // pred_check
        %p406 = pneg %p405
      $region50: #{tpu_custom_call.1} parent=5 // pred_check_branch
        %408 = sbr.rel (%p406) target = $region52
      $region51: #{tpu_custom_call.1} parent=5 // pred_region
        %s409 = ssub.s32 %s17, 2
        // Predicated region
        $region53: #{tpu_custom_call.1} parent=51 // pred_check
          %p410 = pneg %p130
        $region54: #{tpu_custom_call.1} parent=51 // pred_check_branch
          %412 = sbr.rel (%p410) target = $region56
        $region55: #{tpu_custom_call.1} parent=51 // pred_region
          %s413 = sand.u32 %s115, 1
          %s414 = scalar_lea.sflag [#allocation5], %s413
          %s415 = sand.u32 %s115, 1
          %s416 = smul.addr %s415, 16
          %s417 = scalar_lea.vmem [#allocation10], %s416
          %418 = dma.done %s414, 256
        $region56: #{tpu_custom_call.1} parent=51 // pred_fallthru
          _
      $region52: #{tpu_custom_call.1} parent=5 // pred_fallthru
        _
    $region6: #{tpu_custom_call.1} parent=1 // loop_footer
      %s21 = sadd.s32 1, %s17
    $region7: #{tpu_custom_call.1} parent=1 // loop_footer_branch
      %16 = sbr.rel target = $region3
    $region8: #{tpu_custom_call.1} parent=1 // loop_exit
      _
    %419 = vsyncpa [#allocation4], 1
    %s420 = scalar_lea.sflag [#allocation4], 1
    %421 = vsyncpa %s420, 1
    %422 = vsyncpa [#allocation5], 1
    %s423 = scalar_lea.sflag [#allocation5], 1
    %424 = vsyncpa %s423, 1
    %425 = vsyncpa [#allocation6], 1
    %s426 = scalar_lea.sflag [#allocation6], 1
    %427 = vsyncpa %s426, 1
    %428 = vsyncpa [#allocation7], 1
    %s429 = scalar_lea.sflag [#allocation7], 1
    %430 = vsyncpa %s429, 1

</llo_original>
